<compile_context>
chip_gen: v7x
topology: tpu7x:2x2x1
jax: 0.10.0
libtpu: 0.0.40
codegen_flags: <defaults>
</compile_context>

<pallas_src>
import functools

import jax
import jax.numpy as jnp
from jax.experimental import pallas as pl
from jax.experimental.pallas import tpu as pltpu

EPS = 1e-5


# --------------------------------------------------------------------------
# Generation-aware VMEM budgets
# --------------------------------------------------------------------------
def _vmem_capacity_bytes():
    try:
        return int(pltpu.get_tpu_info().vmem_capacity_bytes)
    except Exception:
        return 64 * 1024 * 1024  # conservative default (v7x per-TC VMEM)


def _budgets():
    cap = _vmem_capacity_bytes()
    if cap >= 96 * 1024 * 1024:
        # v5e / v6e: 128 MiB physical VMEM -> larger blocks, fewer grid steps.
        return 40 * 1024 * 1024, 64 * 1024 * 1024
    # v7x: 64 MiB physical VMEM -> leave headroom for the f32 working set.
    return 20 * 1024 * 1024, 40 * 1024 * 1024


# --------------------------------------------------------------------------
# Main (batch-resident) path: one kernel, grid over feature tiles.
# --------------------------------------------------------------------------
def _batchnorm1d_resident_kernel(x_ref, gamma_ref, beta_ref, o_ref):
    # Block is (N, tD): the full batch, one lane-dense slice of features.
    xf = x_ref[...].astype(jnp.float32)
    inv_n = jnp.float32(1.0 / xf.shape[0])

    # Two-pass statistics: x is resident in VMEM, so the re-read is free and
    # avoids E[x^2] - E[x]^2 cancellation.
    mean = jnp.sum(xf, axis=0, keepdims=True) * inv_n            # (1, tD)
    centered = xf - mean
    var = jnp.sum(centered * centered, axis=0, keepdims=True) * inv_n
    inv_std = jax.lax.rsqrt(var + EPS)                           # EUP slot

    a = inv_std * gamma_ref[...].astype(jnp.float32)             # (1, tD)
    beta = beta_ref[...].astype(jnp.float32)
    # y = (x - mean) * inv_std * gamma + beta  -> 2 VPU ops per element.
    o_ref[...] = (centered * a + beta).astype(o_ref.dtype)


def _pick_tile_d(N, D, itemsize, budget):
    """Largest feature-tile width whose VMEM footprint fits the budget.

    Returns None when even a 128-wide (or full-D for D<=128) batch slab does
    not fit -> caller must use the N-split fallback.
    """
    # Per-column bytes: double-buffered input + output block plus ~2 in-kernel
    # f32 temporaries (x cast / centered).
    per_col = N * (4 * itemsize + 8)
    max_cols = budget // per_col
    if max_cols < min(D, 128):
        return None
    if D <= 128:
        return D  # single block; last dim == full array dim is legal
    tD = min((max_cols // 128) * 128, pl.cdiv(D, 128) * 128)
    tD = max(tD, 128)
    if pl.cdiv(D, tD) == 1:
        # Ensure >= 2 feature tiles so "parallel" shards across v7x's 2 TCs
        # (one extra ~600-cycle grid step elsewhere is negligible).
        tD = max(128, pl.cdiv(pl.cdiv(D, 2), 128) * 128)
    return tD


# --------------------------------------------------------------------------
# Large-N fallback: N-reduction stats pass + parallel normalize sweep.
# --------------------------------------------------------------------------
def _nsplit_stats_kernel(N, tN, x_ref, sum_ref, sumsq_ref):
    n = pl.program_id(1)

    @pl.when(n == 0)
    def _():
        sum_ref[...] = jnp.zeros_like(sum_ref)
        sumsq_ref[...] = jnp.zeros_like(sumsq_ref)

    xf = x_ref[...].astype(jnp.float32)                          # (tN, tD)
    if N % tN != 0:
        # Mask the ragged batch edge (out-of-bounds rows are unspecified).
        row = jax.lax.broadcasted_iota(jnp.int32, xf.shape, 0) + n * tN
        xf = jnp.where(row < N, xf, 0.0)
    sum_ref[...] += jnp.sum(xf, axis=0, keepdims=True)
    sumsq_ref[...] += jnp.sum(xf * xf, axis=0, keepdims=True)


def _nsplit_apply_kernel(x_ref, a_ref, b_ref, o_ref):
    y = x_ref[...].astype(jnp.float32) * a_ref[...] + b_ref[...]
    o_ref[...] = y.astype(o_ref.dtype)


def _normalize_batch_nsplit(x, gamma, beta, itemsize, budget, vmem_limit):
    # TODO(synk): single-pass moments (E[x^2]-E[x]^2) here can lose precision
    # when |mean| >> std; accepted trade-off vs. a third full HBM read of x.
    N, D = x.shape
    tD = D if D <= 128 else min(512, pl.cdiv(D, 128) * 128)
    per_row = tD * (4 * itemsize + 8)
    max_rows = max(8, budget // per_row)
    tN = N if N <= max_rows else (max_rows // 8) * 8
    nD = pl.cdiv(D, tD)
    nN = pl.cdiv(N, tN)

    sums, sumsqs = pl.pallas_call(
        functools.partial(_nsplit_stats_kernel, N, tN),
        out_shape=(jax.ShapeDtypeStruct((1, D), jnp.float32),
                   jax.ShapeDtypeStruct((1, D), jnp.float32)),
        grid_spec=pltpu.PrefetchScalarGridSpec(
            num_scalar_prefetch=0,
            grid=(nD, nN),                                   # reduction axis last
            in_specs=[pl.BlockSpec((tN, tD), lambda j, n: (n, j))],
            out_specs=[pl.BlockSpec((1, tD), lambda j, n: (0, j)),
                       pl.BlockSpec((1, tD), lambda j, n: (0, j))],
        ),
        compiler_params=pltpu.CompilerParams(
            dimension_semantics=("parallel", "arbitrary"),
            vmem_limit_bytes=vmem_limit,
        ),
    )(x)

    # Tiny (1, D) finalization: plain XLA, not worth a kernel.
    mean = sums / N
    var = jnp.maximum(sumsqs / N - mean * mean, 0.0)
    a = jax.lax.rsqrt(var + EPS) * gamma.astype(jnp.float32)
    b = beta.astype(jnp.float32) - mean * a

    return pl.pallas_call(
        _nsplit_apply_kernel,
        out_shape=jax.ShapeDtypeStruct((N, D), x.dtype),
        grid_spec=pltpu.PrefetchScalarGridSpec(
            num_scalar_prefetch=0,
            grid=(nN, nD),
            in_specs=[
                pl.BlockSpec((tN, tD), lambda i, j: (i, j)),
                pl.BlockSpec((1, tD), lambda i, j: (0, j)),
                pl.BlockSpec((1, tD), lambda i, j: (0, j)),
            ],
            out_specs=pl.BlockSpec((tN, tD), lambda i, j: (i, j)),
        ),
        compiler_params=pltpu.CompilerParams(
            dimension_semantics=("parallel", "parallel"),
            vmem_limit_bytes=vmem_limit,
        ),
    )(x, a, b)


# --------------------------------------------------------------------------
# Public wrapper
# --------------------------------------------------------------------------
def normalize_batch(x, gamma, beta, *, force_nsplit=False):
    """BatchNorm1d forward (training-mode batch stats) as Pallas TPU kernels.

    x: (N, D) float array; gamma, beta: (1, D). Returns (N, D) in x.dtype.
    """
    N, D = x.shape
    itemsize = jnp.dtype(x.dtype).itemsize
    budget, vmem_limit = _budgets()

    tD = None if force_nsplit else _pick_tile_d(N, D, itemsize, budget)
    if tD is None:
        return _normalize_batch_nsplit(x, gamma, beta, itemsize, budget,
                                       vmem_limit)

    grid = (pl.cdiv(D, tD),)
    return pl.pallas_call(
        _batchnorm1d_resident_kernel,
        out_shape=jax.ShapeDtypeStruct((N, D), x.dtype),
        grid_spec=pltpu.PrefetchScalarGridSpec(
            num_scalar_prefetch=0,
            grid=grid,
            in_specs=[
                pl.BlockSpec((N, tD), lambda j: (0, j)),
                pl.BlockSpec((1, tD), lambda j: (0, j)),
                pl.BlockSpec((1, tD), lambda j: (0, j)),
            ],
            out_specs=pl.BlockSpec((N, tD), lambda j: (0, j)),
        ),
        compiler_params=pltpu.CompilerParams(
            dimension_semantics=("parallel",),
            vmem_limit_bytes=vmem_limit,
        ),
    )(x, gamma, beta)


if __name__ == "__main__":
    key = jax.random.PRNGKey(0)
    N, D = 8, 32  # small (batch, hidden) consistent with BatchNorm1d(dim=32)
    x = jax.random.normal(key, (N, D), dtype=jnp.float32)

    # PyTorch BatchNorm1d default affine init: weight = 1, bias = 0.
    gamma = jnp.ones((1, D), dtype=jnp.float32)
    beta = jnp.zeros((1, D), dtype=jnp.float32)

    # Reference in plain JAX (biased batch variance, eps = 1e-5).
    mean = jnp.mean(x, axis=0, keepdims=True)
    var = jnp.mean((x - mean) ** 2, axis=0, keepdims=True)
    y_ref = (x - mean) / jnp.sqrt(var + EPS) * gamma + beta

    # Main (batch-resident) path.
    y = jax.block_until_ready(normalize_batch(x, gamma, beta))
    assert jnp.allclose(y, y_ref, atol=1e-5, rtol=1e-5), "resident path mismatch"

    # Also exercise the large-N fallback path at the same tiny shape.
    y2 = jax.block_until_ready(normalize_batch(x, gamma, beta, force_nsplit=True))
    assert jnp.allclose(y2, y_ref, atol=1e-5, rtol=1e-5), "n-split path mismatch"

    print("KERNEL_OK")
</pallas_src>

<mosaic_0001>
module attributes {stable_mosaic.version = 11 : i64} {
  func.func @_batchnorm1d_resident_kernel(%arg0: i32, %arg1: memref<8x32xf32, #tpu.memory_space<vmem>>, %arg2: memref<1x32xf32, #tpu.memory_space<vmem>>, %arg3: memref<1x32xf32, #tpu.memory_space<vmem>>, %arg4: memref<8x32xf32, #tpu.memory_space<vmem>>) attributes {dimension_semantics = [#tpu.dimension_semantics<parallel>], iteration_bounds = array<i64: 1>, scalar_prefetch = 0 : i64, scratch_operands = 0 : i64, tpu.core_type = #tpu.core_type<tc>, window_params = [{transform_indices = @transform_0, window_bounds = array<i64: 8, 32>}, {transform_indices = @transform_1, window_bounds = array<i64: 1, 32>}, {transform_indices = @transform_2, window_bounds = array<i64: 1, 32>}, {transform_indices = @transform_3, window_bounds = array<i64: 8, 32>}]} {
    %c0 = arith.constant 0 : index
    %c0_0 = arith.constant 0 : index
    %0 = vector.load %arg1[%c0, %c0_0] : memref<8x32xf32, #tpu.memory_space<vmem>>, vector<8x32xf32>
    %cst = arith.constant dense<0.000000e+00> : vector<32xf32>
    %1 = vector.multi_reduction <add>, %0, %cst [0] : vector<8x32xf32> to vector<32xf32>
    %2 = vector.shape_cast %1 : vector<32xf32> to vector<1x32xf32>
    %cst_1 = arith.constant 1.250000e-01 : f32
    %3 = vector.broadcast %cst_1 : f32 to vector<1x32xf32>
    %4 = arith.mulf %2, %3 : vector<1x32xf32>
    %5 = vector.broadcast %4 : vector<1x32xf32> to vector<8x32xf32>
    %6 = arith.subf %0, %5 : vector<8x32xf32>
    %7 = arith.mulf %6, %6 : vector<8x32xf32>
    %cst_2 = arith.constant dense<0.000000e+00> : vector<32xf32>
    %8 = vector.multi_reduction <add>, %7, %cst_2 [0] : vector<8x32xf32> to vector<32xf32>
    %9 = vector.shape_cast %8 : vector<32xf32> to vector<1x32xf32>
    %cst_3 = arith.constant 1.250000e-01 : f32
    %10 = vector.broadcast %cst_3 : f32 to vector<1x32xf32>
    %11 = arith.mulf %9, %10 : vector<1x32xf32>
    %cst_4 = arith.constant 9.99999974E-6 : f32
    %12 = vector.broadcast %cst_4 : f32 to vector<1x32xf32>
    %13 = arith.addf %11, %12 : vector<1x32xf32>
    %14 = math.rsqrt %13 : vector<1x32xf32>
    %c0_5 = arith.constant 0 : index
    %c0_6 = arith.constant 0 : index
    %15 = vector.load %arg2[%c0_5, %c0_6] : memref<1x32xf32, #tpu.memory_space<vmem>>, vector<1x32xf32>
    %16 = arith.mulf %14, %15 : vector<1x32xf32>
    %c0_7 = arith.constant 0 : index
    %c0_8 = arith.constant 0 : index
    %17 = vector.load %arg3[%c0_7, %c0_8] : memref<1x32xf32, #tpu.memory_space<vmem>>, vector<1x32xf32>
    %18 = vector.broadcast %16 : vector<1x32xf32> to vector<8x32xf32>
    %19 = arith.mulf %6, %18 : vector<8x32xf32>
    %20 = vector.broadcast %17 : vector<1x32xf32> to vector<8x32xf32>
    %21 = arith.addf %19, %20 : vector<8x32xf32>
    %c0_9 = arith.constant 0 : index
    %c0_10 = arith.constant 0 : index
    %22 = vector.load %arg4[%c0_9, %c0_10] : memref<8x32xf32, #tpu.memory_space<vmem>>, vector<8x32xf32>
    tpu.vector_store %arg4[%c0_9, %c0_10], %21 {strides = array<i32>} : memref<8x32xf32, #tpu.memory_space<vmem>>, vector<8x32xf32>,
    return
  }
  func.func @transform_0(%arg0: i32) -> (i32, i32) {
    %c0_i32 = arith.constant 0 : i32
    %c0_i32_0 = arith.constant 0 : i32
    return %c0_i32, %arg0 : i32, i32
  }
  func.func @transform_1(%arg0: i32) -> (i32, i32) {
    %c0_i32 = arith.constant 0 : i32
    %c0_i32_0 = arith.constant 0 : i32
    return %c0_i32, %arg0 : i32, i32
  }
  func.func @transform_2(%arg0: i32) -> (i32, i32) {
    %c0_i32 = arith.constant 0 : i32
    %c0_i32_0 = arith.constant 0 : i32
    return %c0_i32, %arg0 : i32, i32
  }
  func.func @transform_3(%arg0: i32) -> (i32, i32) {
    %c0_i32 = arith.constant 0 : i32
    %c0_i32_0 = arith.constant 0 : i32
    return %c0_i32, %arg0 : i32, i32
  }
}

</mosaic_0001>

<llo_original>
// kernel: tpu_custom_call.1
$region0: #{tpu_custom_call.1}
  #allocation0 [shape = 'u32[]', space=smem, size = 0x4, offset = 0x4, fixed_abs, tag = 'smem constant byte address 0x4 - core index']
  #allocation1 [shape = 'u32[144,128]{1,0:T(1,128)}', space=vmem, size = 0x12000, scoped, tag = 'internal scratch']
  %s0 = inlined_call_operand.hbm [shape: f32[8,32], index: 0, kind: input, shape index: {}]
  %s1 = inlined_call_operand.vmem [shape: f32[1,32], index: 1, kind: input, shape index: {}]
  %s2 = inlined_call_operand.vmem [shape: f32[1,32], index: 2, kind: input, shape index: {}]
  %s3 = inlined_call_operand.hbm [shape: f32[8,32], index: 3, kind: output, shape index: {}]
  %s4 = sld [smem:[#allocation0]]
  $region26: #{tpu_custom_call.1} parent=0
    _
  %s6 = ssub.s32 1, %s4
  %s7 = scalar_select 0, %s6, %s4
  $region1: #{tpu_custom_call.1} parent=0
    #allocation2 [shape = 'u8[4096]{0}', space=vmem, size = 0x1000, scoped, tag = 'input window, operand 0, single buffered']
    #allocation3 [shape = 's32[1]{0}', space=sflag, size = 0x4, scoped, tag = 'scoped memory for tpu_custom_call.1']
    #allocation4 [shape = 's32[1]{0}', space=sflag, size = 0x4, scoped, tag = 'scoped memory for tpu_custom_call.1']
    #allocation5 [shape = 'u8[4096]{0}', space=vmem, size = 0x1000, scoped, tag = 'output window, operand 0, single buffered']
    %8 = vsyncpa [#allocation3], 0
    %9 = vsyncpa [#allocation4], 0
    // Predicated region
    $region2: #{tpu_custom_call.1} parent=1 // pred_check
      _
    $region3: #{tpu_custom_call.1} parent=1 // pred_check_branch
      %11 = sbr.rel (0) target = $region5
    $region4: #{tpu_custom_call.1} parent=1 // pred_region
      %s13 = ssub.s32 128, 128
      %14 = vsyncadd [#allocation3], %s13
      %s16 = sshll.u32 [#allocation2], 4
      %s17 = int_to_ptr.vmem [resolvable:$true] %s16
      %19 = dma.hbm_to_vmem [thread:$0]  %s0, 128, %s17, [#allocation3]
    $region5: #{tpu_custom_call.1} parent=1 // pred_fallthru
      _
    // Predicated region
    $region6: #{tpu_custom_call.1} parent=1 // pred_check
      _
    $region7: #{tpu_custom_call.1} parent=1 // pred_check_branch
      %21 = sbr.rel (0) target = $region9
    $region8: #{tpu_custom_call.1} parent=1 // pred_region
      _
    $region9: #{tpu_custom_call.1} parent=1 // pred_fallthru
      _
    // Predicated region
    $region10: #{tpu_custom_call.1} parent=1 // pred_check
      _
    $region11: #{tpu_custom_call.1} parent=1 // pred_check_branch
      %23 = sbr.rel (0) target = $region13
    $region12: #{tpu_custom_call.1} parent=1 // pred_region
      _
    $region13: #{tpu_custom_call.1} parent=1 // pred_fallthru
      _
    // Predicated region
    $region14: #{tpu_custom_call.1} parent=1 // pred_check
      _
    $region15: #{tpu_custom_call.1} parent=1 // pred_check_branch
      %25 = sbr.rel (0) target = $region17
    $region16: #{tpu_custom_call.1} parent=1 // pred_region
      %26 = dma.done [#allocation3], 128
    $region17: #{tpu_custom_call.1} parent=1 // pred_fallthru
      _
    %v27 = vld [vmem:[#allocation2] sm:$0xff]
    %vm28 = vcmask 261120
    %v29 = vsel %vm28, %v27, 0.0
    %v30 = vrot.slane %v29, 4
    %v31 = vadd.f32 %v29, %v30
    %v32 = vrot.slane %v31, 2
    %v33 = vadd.f32 %v31, %v32
    %v34 = vrot.slane %v33, 1
    %v35 = vadd.f32 %v33, %v34
    %v36 = vmul.f32 %v35, 0.125
    %v37 = vsub.f32 %v27, %v36
    %v38 = vmul.f32 %v37, %v37
    %v39 = vsel %vm28, %v38, 0.0
    %v40 = vrot.slane %v39, 4
    %v41 = vadd.f32 %v39, %v40
    %v42 = vrot.slane %v41, 2
    %v43 = vadd.f32 %v41, %v42
    %v44 = vrot.slane %v43, 1
    %v45 = vadd.f32 %v43, %v44
    %v46 = vmul.f32 %v45, 0.125
    %v47 = vadd.f32 %v46, 1e-05
    %v48 = vrsqrt.pop %v47
    %v49 = vld [vmem:[%s1] sm:$0x1]
    %v50 = vmul.f32 %v48, %v49
    %v51 = vld [vmem:[%s2] sm:$0x1]
    %v52 = vlaneseq
    %v53 = vshrl.u32 %v52, 7
    %v54 = vsub.s32 0, %v53
    %v55 = vrot.slane %v50, %v54
    %v56 = vmul.f32 %v37, %v55
    %v58 = vlaneseq
    %v59 = vshrl.u32 %v58, 7
    %v60 = vsub.s32 0, %v59
    %v61 = vrot.slane %v51, %v60
    %v63 = vadd.f32 %v56, %v61
    %64 = vst.msk [vmem:[#allocation5] sm:$0xff] %vm28, %v63
    // Predicated region
    $region18: #{tpu_custom_call.1} parent=1 // pred_check
      _
    $region19: #{tpu_custom_call.1} parent=1 // pred_check_branch
      %66 = sbr.rel (0) target = $region21
    $region20: #{tpu_custom_call.1} parent=1 // pred_region
      %s68 = ssub.s32 128, 128
      %69 = vsyncadd [#allocation4], %s68
      %s71 = sshll.u32 [#allocation5], 4
      %s72 = int_to_ptr.vmem [resolvable:$true] %s71
      %74 = dma.vmem_to_hbm [thread:$0]  %s72, 128, %s3, [#allocation4]
    $region21: #{tpu_custom_call.1} parent=1 // pred_fallthru
      _
    // Predicated region
    $region22: #{tpu_custom_call.1} parent=1 // pred_check
      _
    $region23: #{tpu_custom_call.1} parent=1 // pred_check_branch
      %76 = sbr.rel (0) target = $region25
    $region24: #{tpu_custom_call.1} parent=1 // pred_region
      %77 = dma.done [#allocation4], 128
    $region25: #{tpu_custom_call.1} parent=1 // pred_fallthru
      _
    %78 = vsyncpa [#allocation3], 1
    %79 = vsyncpa [#allocation4], 1

</llo_original>
